<compile_context>
chip_gen: v5e
topology: v5e:2x2
jax: 0.10.0
libtpu: 0.0.40
codegen_flags: <defaults>
</compile_context>

<pallas_src>
import jax
import jax.numpy as jnp
from jax.experimental import pallas as pl
from jax.experimental.pallas import tpu as pltpu

_MAX_TILE_ROWS = 512


# ----------------------------- chip / VMEM config -------------------------- #
def _vmem_budgets():
    """(row-tile byte budget, vmem_limit_bytes) chosen per chip generation."""
    try:
        cap = int(pltpu.get_tpu_info().vmem_capacity_bytes)
    except Exception:  # info unavailable -> conservative (v7x-safe) defaults
        cap = 64 * 1024 * 1024
    if cap >= 96 * 1024 * 1024:                      # v5e / v6e: 128 MiB VMEM
        return 24 * 1024 * 1024, 64 * 1024 * 1024
    return 10 * 1024 * 1024, 40 * 1024 * 1024        # v7x: 64 MiB VMEM


def _pick_tile_rows(ht, wt, hi, wi, has_mask, fused, tile_budget):
    """Rows per grid step from an honest per-step VMEM footprint estimate."""
    per_row = wt * 4 * 2                 # target tile (f32), double-buffered
    if has_mask:
        per_row += wt * 1 * 2            # int8 mask tile, double-buffered
    if fused:
        per_row += wt * 4                # interp intermediate (f32, full width)
    per_row += wt * 8                    # g / g^2 / select temporaries (slack)

    fixed = 3 * 8 * wt * 4               # (8, wt) accumulators
    if fused:
        ht_pad = ht + _MAX_TILE_ROWS     # upper bound on padded Ry rows
        fixed += 2 * ht_pad * hi * 4     # Ry f32 (double-buffered allocation)
        fixed += 2 * wi * wt * 2         # Rx bf16
        fixed += 2 * hi * wi * 2         # pred bf16
        fixed += hi * wt * 2             # pred @ Rx scratch (bf16)
        # TODO(synk): for pathologically tall low-res inputs (huge Ry) fall
        # back to streaming Ry row tiles instead of keeping it resident.

    avail = max(0, tile_budget - fixed)
    th = avail // max(1, per_row)
    th = int(max(8, min(_MAX_TILE_ROWS, (th // 8) * 8)))
    if th >= ht:
        return int(ht)                   # one block spanning the full height
    return th


def _interp_matrix(out_size, in_size):
    """(out_size, in_size) matrix M so that M @ v == 1-D resize of v with
    mode='bilinear', align_corners=True.  Each row has <= 2 nonzeros."""
    if out_size == 1 or in_size == 1:
        scale = 0.0
    else:
        scale = (in_size - 1) / (out_size - 1)
    src = jnp.arange(out_size, dtype=jnp.float32) * scale
    i0 = jnp.clip(jnp.floor(src).astype(jnp.int32), 0, in_size - 1)
    i1 = jnp.clip(i0 + 1, 0, in_size - 1)
    w = src - i0.astype(jnp.float32)
    cols = jnp.arange(in_size, dtype=jnp.int32)
    m0 = (cols[None, :] == i0[:, None]).astype(jnp.float32) * (1.0 - w)[:, None]
    m1 = (cols[None, :] == i1[:, None]).astype(jnp.float32) * w[:, None]
    return m0 + m1


# ----------------------------- Pallas kernels ------------------------------ #
def _accumulate(g, valid, acc_g, acc_gg, acc_n, *, sub):
    """Pure-VPU accumulation into lane-dense (sub, wt) partials."""
    gg = g * g
    w = g.shape[-1]
    if sub == 8:
        acc_g[...] += jnp.sum(g.reshape(-1, 8, w), axis=0)
        acc_gg[...] += jnp.sum(gg.reshape(-1, 8, w), axis=0)
        if acc_n is not None:
            acc_n[...] += jnp.sum(
                valid.astype(jnp.float32).reshape(-1, 8, w), axis=0)
    else:
        acc_g[...] += jnp.sum(g, axis=0, keepdims=True)
        acc_gg[...] += jnp.sum(gg, axis=0, keepdims=True)
        if acc_n is not None:
            acc_n[...] += jnp.sum(valid.astype(jnp.float32), axis=0,
                                  keepdims=True)


def _tile_body(interp, tgt_ref, msk_ref, out_s, out_ss, out_n,
               acc_g, acc_gg, acc_n, *, ht, th, sub):
    r_id = pl.program_id(1)

    @pl.when(r_id == 0)
    def _init():
        acc_g[...] = jnp.zeros_like(acc_g)
        acc_gg[...] = jnp.zeros_like(acc_gg)
        if acc_n is not None:
            acc_n[...] = jnp.zeros_like(acc_n)

    tgt = tgt_ref[...]
    # Mask rows beyond the true height (partial last tile reads padded data).
    row_ids = jax.lax.broadcasted_iota(jnp.int32, tgt.shape, 0) + r_id * th
    valid = row_ids < ht
    if msk_ref is not None:
        valid = jnp.logical_and(valid, msk_ref[...] != 0)

    # Single EUP log per element.  jnp.where must stay a true select so that
    # Inf/NaN from masked-out pixels / padded tail rows never propagates.
    g = jnp.where(valid, jnp.log(interp / tgt), 0.0)
    _accumulate(g, valid, acc_g, acc_gg, acc_n, sub=sub)

    @pl.when(r_id == pl.num_programs(1) - 1)
    def _finalize():
        # One lane/sublane reduce per batch; per-batch scalars go to HBM,
        # the mean/var/sqrt epilogue runs in plain JAX.
        out_s[...] = jnp.sum(acc_g[...], keepdims=True)
        out_ss[...] = jnp.sum(acc_gg[...], keepdims=True)
        if out_n is not None:
            out_n[...] = jnp.sum(acc_n[...], keepdims=True)


def _make_fused_kernel(*, ht, th, sub, has_mask):
    """Kernel that bilinearly upsamples the low-res prediction on the fly."""
    def kernel(*refs):
        if has_mask:
            (ry_ref, rx_ref, pred_ref, tgt_ref, msk_ref,
             out_s, out_ss, out_n, predrx, acc_g, acc_gg, acc_n) = refs
        else:
            (ry_ref, rx_ref, pred_ref, tgt_ref,
             out_s, out_ss, predrx, acc_g, acc_gg) = refs
            msk_ref = out_n = acc_n = None
        r_id = pl.program_id(1)

        @pl.when(r_id == 0)
        def _precompute():
            # Once per batch: pred (hi, wi) @ Rx (wi, wt) -> (hi, wt) bf16.
            predrx[...] = jnp.dot(
                pred_ref[...], rx_ref[...],
                preferred_element_type=jnp.float32).astype(predrx.dtype)

        start = r_id * th
        if th % 8 == 0:
            start = pl.multiple_of(start, 8)
        # Ry stays f32 in VMEM (aligned dynamic sublane slicing); the tiny
        # (th, hi) slice is cast to bf16 for a native-rate MXU matmul.
        ry_tile = ry_ref[pl.ds(start, th), :].astype(jnp.bfloat16)
        interp = jnp.dot(ry_tile, predrx[...],
                         preferred_element_type=jnp.float32)   # (th, wt) f32
        _tile_body(interp, tgt_ref, msk_ref, out_s, out_ss, out_n,
                   acc_g, acc_gg, acc_n, ht=ht, th=th, sub=sub)
    return kernel


def _make_direct_kernel(*, ht, th, sub, has_mask):
    """Kernel for the no-resize path (input already at target resolution)."""
    def kernel(*refs):
        if has_mask:
            (inp_ref, tgt_ref, msk_ref,
             out_s, out_ss, out_n, acc_g, acc_gg, acc_n) = refs
        else:
            inp_ref, tgt_ref, out_s, out_ss, acc_g, acc_gg = refs
            msk_ref = out_n = acc_n = None
        _tile_body(inp_ref[...], tgt_ref, msk_ref, out_s, out_ss, out_n,
                   acc_g, acc_gg, acc_n, ht=ht, th=th, sub=sub)
    return kernel


# ----------------------------- public wrapper ------------------------------ #
def silog_loss(input, target, mask=None, interpolate=True):
    """JAX/Pallas equivalent of SILogLoss.forward.

    input: (N, 1, Hi, Wi)   target: (N, Ht, Wt)   mask: bool (N, Ht, Wt) or None
    """
    input = jnp.asarray(input, jnp.float32)
    target = jnp.asarray(target, jnp.float32)
    n_b = int(target.shape[0])
    ht, wt = int(target.shape[-2]), int(target.shape[-1])
    hi, wi = int(input.shape[-2]), int(input.shape[-1])
    has_mask = mask is not None

    pred = jnp.squeeze(input, axis=1)   # (N, Hi, Wi); module assumes C == 1
    # align_corners bilinear resize to the same size is the identity.
    fused = bool(interpolate) and (hi, wi) != (ht, wt)

    tile_budget, vmem_limit = _vmem_budgets()
    th = _pick_tile_rows(ht, wt, hi, wi, has_mask, fused, tile_budget)
    if has_mask and th < ht:
        # int8 mask tiles need a sublane multiple of 32.
        th = max(32, (th // 32) * 32)
        if th >= ht:
            th = ht
    grid_r = int(pl.cdiv(ht, th))
    grid = (n_b, grid_r)
    sub = 8 if th % 8 == 0 else 1
    static_count = float(n_b * ht * wt)   # used only when mask is None

    tgt_spec = pl.BlockSpec((None, th, wt), lambda n, r: (n, r, 0))

    out_shapes = [jax.ShapeDtypeStruct((n_b, 1, 1), jnp.float32),   # sum g
                  jax.ShapeDtypeStruct((n_b, 1, 1), jnp.float32)]   # sum g^2
    out_specs = [pl.BlockSpec((None, 1, 1), lambda n, r: (n, 0, 0)),
                 pl.BlockSpec((None, 1, 1), lambda n, r: (n, 0, 0))]

    scratch = []
    if fused:
        ht_pad = grid_r * th
        ry = _interp_matrix(ht, hi)                              # (Ht, Hi) f32
        if ht_pad > ht:
            ry = jnp.pad(ry, ((0, ht_pad - ht), (0, 0)))
        rx = _interp_matrix(wt, wi).T.astype(jnp.bfloat16)       # (Wi, Wt)
        pred_in = pred.astype(jnp.bfloat16)
        in_specs = [
            pl.BlockSpec((ht_pad, hi), lambda n, r: (0, 0)),        # Ry resident
            pl.BlockSpec((wi, wt), lambda n, r: (0, 0)),            # Rx resident
            pl.BlockSpec((None, hi, wi), lambda n, r: (n, 0, 0)),   # pred bf16
            tgt_spec,
        ]
        args = [ry, rx, pred_in, target]
        scratch.append(pltpu.VMEM((hi, wt), jnp.bfloat16))          # pred @ Rx
        kernel = _make_fused_kernel(ht=ht, th=th, sub=sub, has_mask=has_mask)
    else:
        in_specs = [pl.BlockSpec((None, th, wt), lambda n, r: (n, r, 0)),
                    tgt_spec]
        args = [pred, target]
        kernel = _make_direct_kernel(ht=ht, th=th, sub=sub, has_mask=has_mask)

    if has_mask:
        in_specs.append(pl.BlockSpec((None, th, wt), lambda n, r: (n, r, 0)))
        args.append(jnp.asarray(mask).astype(jnp.int8))             # 1 B/elem
        out_shapes.append(jax.ShapeDtypeStruct((n_b, 1, 1), jnp.float32))
        out_specs.append(pl.BlockSpec((None, 1, 1), lambda n, r: (n, 0, 0)))

    scratch += [pltpu.VMEM((sub, wt), jnp.float32),    # lane partials sum g
                pltpu.VMEM((sub, wt), jnp.float32)]    # lane partials sum g^2
    if has_mask:
        scratch.append(pltpu.VMEM((sub, wt), jnp.float32))  # valid count

    partials = pl.pallas_call(
        kernel,
        out_shape=tuple(out_shapes),
        grid_spec=pltpu.PrefetchScalarGridSpec(
            num_scalar_prefetch=0,
            grid=grid,
            in_specs=in_specs,
            out_specs=tuple(out_specs),
            scratch_shapes=scratch,
        ),
        compiler_params=pltpu.CompilerParams(
            # Batch axis "parallel": on v7x the two TensorCores split the HBM
            # stream over batches; the row axis carries the accumulator.
            dimension_semantics=("parallel", "arbitrary"),
            vmem_limit_bytes=vmem_limit,
        ),
    )(*args)

    # Tiny epilogue in plain JAX (combines per-batch / per-core partials).
    s = jnp.sum(partials[0])
    ss = jnp.sum(partials[1])
    cnt = jnp.sum(partials[2]) if has_mask else jnp.float32(static_count)
    mean = s / cnt
    # torch.var default: unbiased estimator (divisor n - 1).
    var = (ss - s * s / cnt) / (cnt - 1.0)
    dg = var + 0.15 * mean * mean
    return 10.0 * jnp.sqrt(dg)


# --------------------------- pure-JAX reference ----------------------------- #
def _interpolate_bilinear_align_corners(x, out_hw):
    """Exact NCHW bilinear resize, mode='bilinear', align_corners=True."""
    _, _, H, W = x.shape
    Ho, Wo = out_hw

    def coords(out_size, in_size):
        if out_size == 1 or in_size == 1:
            src = jnp.zeros((out_size,), jnp.float32)
        else:
            src = (jnp.arange(out_size, dtype=jnp.float32)
                   * (in_size - 1) / (out_size - 1))
        i0 = jnp.clip(jnp.floor(src).astype(jnp.int32), 0, in_size - 1)
        i1 = jnp.clip(i0 + 1, 0, in_size - 1)
        w = src - i0.astype(jnp.float32)
        return i0, i1, w

    y0, y1, wy = coords(Ho, H)
    x0, x1, wx = coords(Wo, W)

    top0 = x[:, :, y0][:, :, :, x0]
    top1 = x[:, :, y0][:, :, :, x1]
    bot0 = x[:, :, y1][:, :, :, x0]
    bot1 = x[:, :, y1][:, :, :, x1]

    wx_ = wx[None, None, None, :]
    wy_ = wy[None, None, :, None]
    top = top0 * (1.0 - wx_) + top1 * wx_
    bot = bot0 * (1.0 - wx_) + bot1 * wx_
    return top * (1.0 - wy_) + bot * wy_


def _silog_ref(input, target, mask=None):
    inp = _interpolate_bilinear_align_corners(input, target.shape[-2:])
    inp = jnp.squeeze(inp, axis=1)
    g = jnp.log(inp) - jnp.log(target)
    if mask is None:
        cnt = jnp.float32(g.size)
        s = jnp.sum(g)
        ss = jnp.sum(g * g)
    else:
        m = mask.astype(jnp.float32)
        cnt = jnp.sum(m)
        s = jnp.sum(g * m)
        ss = jnp.sum(g * g * m)
    mean = s / cnt
    var = (ss - s * s / cnt) / (cnt - 1.0)   # torch.var (unbiased)
    return 10.0 * jnp.sqrt(var + 0.15 * mean * mean)


if __name__ == "__main__":
    key = jax.random.PRNGKey(0)
    k1, k2, k3, k4 = jax.random.split(key, 4)
    # low-res prediction, bilinearly upsampled to target resolution in-kernel
    pred = jax.random.uniform(k1, (2, 1, 8, 8), jnp.float32,
                              minval=0.5, maxval=2.0)
    target = jax.random.uniform(k2, (2, 16, 16), jnp.float32,
                                minval=0.5, maxval=2.0)
    mask = jax.random.uniform(k3, (2, 16, 16), jnp.float32) > 0.3

    # fused-upsample path, no mask
    loss = jax.block_until_ready(
        silog_loss(pred, target, mask=None, interpolate=True))
    ref = _silog_ref(pred, target, None)
    assert jnp.isfinite(loss), "loss is not finite"
    assert abs(float(loss) - float(ref)) <= 1e-2 * (1.0 + abs(float(ref))), (
        float(loss), float(ref))

    # fused-upsample path, masked
    loss_m = jax.block_until_ready(
        silog_loss(pred, target, mask=mask, interpolate=True))
    ref_m = _silog_ref(pred, target, mask)
    assert jnp.isfinite(loss_m), "masked loss is not finite"
    assert abs(float(loss_m) - float(ref_m)) <= 1e-2 * (1.0 + abs(float(ref_m))), (
        float(loss_m), float(ref_m))

    # direct path (input already at target resolution -> identity resize)
    pred_full = jax.random.uniform(k4, (2, 1, 16, 16), jnp.float32,
                                   minval=0.5, maxval=2.0)
    loss_d = jax.block_until_ready(
        silog_loss(pred_full, target, mask=None, interpolate=True))
    ref_d = _silog_ref(pred_full, target, None)
    assert jnp.isfinite(loss_d), "direct loss is not finite"
    assert abs(float(loss_d) - float(ref_d)) <= 1e-2 * (1.0 + abs(float(ref_d))), (
        float(loss_d), float(ref_d))

    print("KERNEL_OK")
</pallas_src>

<mosaic_0001>
module attributes {stable_mosaic.version = 11 : i64} {
  func.func @kernel(%arg0: i32, %arg1: i32, %arg2: memref<16x8xf32, #tpu.memory_space<vmem>>, %arg3: memref<8x16xbf16, #tpu.memory_space<vmem>>, %arg4: memref<1x8x8xbf16, #tpu.memory_space<vmem>>, %arg5: memref<1x16x16xf32, #tpu.memory_space<vmem>>, %arg6: memref<1x1x1xf32, #tpu.memory_space<vmem>>, %arg7: memref<1x1x1xf32, #tpu.memory_space<vmem>>, %arg8: memref<8x16xbf16, #tpu.memory_space<vmem>>, %arg9: memref<8x16xf32, #tpu.memory_space<vmem>>, %arg10: memref<8x16xf32, #tpu.memory_space<vmem>>) attributes {dimension_semantics = [#tpu.dimension_semantics<parallel>, #tpu.dimension_semantics<arbitrary>], iteration_bounds = array<i64: 2, 1>, scalar_prefetch = 0 : i64, scratch_operands = 3 : i64, tpu.core_type = #tpu.core_type<tc>, window_params = [{pipeline_mode = #tpu.pipeline_mode<synchronous>, transform_indices = @transform_0, window_bounds = array<i64: 16, 8>}, {pipeline_mode = #tpu.pipeline_mode<synchronous>, transform_indices = @transform_1, window_bounds = array<i64: 8, 16>}, {transform_indices = @transform_2, window_bounds = array<i64: 1, 8, 8>}, {transform_indices = @transform_3, window_bounds = array<i64: 1, 16, 16>}, {transform_indices = @transform_4, window_bounds = array<i64: 1, 1, 1>}, {transform_indices = @transform_5, window_bounds = array<i64: 1, 1, 1>}]} {
    %c0_i32 = arith.constant 0 : i32
    %0 = arith.cmpi eq, %arg1, %c0_i32 : i32
    %1 = arith.extui %0 : i1 to i32
    %c0_i32_0 = arith.constant 0 : i32
    %2 = arith.cmpi ne, %1, %c0_i32_0 : i32
    scf.if %2 {
      %c0_23 = arith.constant 0 : index
      %c0_24 = arith.constant 0 : index
      %c0_25 = arith.constant 0 : index
      %39 = vector.load %arg4[%c0_23, %c0_24, %c0_25] : memref<1x8x8xbf16, #tpu.memory_space<vmem>>, vector<1x8x8xbf16>
      %40 = vector.shape_cast %39 : vector<1x8x8xbf16> to vector<8x8xbf16>
      %c0_26 = arith.constant 0 : index
      %c0_27 = arith.constant 0 : index
      %41 = vector.load %arg3[%c0_26, %c0_27] : memref<8x16xbf16, #tpu.memory_space<vmem>>, vector<8x16xbf16>
      %cst_28 = arith.constant dense<0.000000e+00> : vector<8x16xf32>
      %42 = tpu.matmul %40, %41, %cst_28 {dimension_numbers = #tpu.dot_dimension_numbers<[1], [0], [0], [1], [0, 0, 1, 1], [], []>} : vector<8x8xbf16>, vector<8x16xbf16>, vector<8x16xf32> -> vector<8x16xf32>
      %43 = arith.truncf %42 : vector<8x16xf32> to vector<8x16xbf16>
      %c0_29 = arith.constant 0 : index
      %c0_30 = arith.constant 0 : index
      %44 = vector.load %arg8[%c0_29, %c0_30] : memref<8x16xbf16, #tpu.memory_space<vmem>>, vector<8x16xbf16>
      tpu.vector_store %arg8[%c0_29, %c0_30], %43 {strides = array<i32>} : memref<8x16xbf16, #tpu.memory_space<vmem>>, vector<8x16xbf16>,
    } else {
    }
    %c16_i32 = arith.constant 16 : i32
    %3 = arith.muli %arg1, %c16_i32 : i32
    %4 = tpu.assume_multiple %3, 8 : i32
    %5 = arith.index_cast %4 : i32 to index
    %c0 = arith.constant 0 : index
    %6 = vector.load %arg2[%5, %c0] : memref<16x8xf32, #tpu.memory_space<vmem>>, vector<16x8xf32>
    %7 = arith.truncf %6 : vector<16x8xf32> to vector<16x8xbf16>
    %c0_1 = arith.constant 0 : index
    %c0_2 = arith.constant 0 : index
    %8 = vector.load %arg8[%c0_1, %c0_2] : memref<8x16xbf16, #tpu.memory_space<vmem>>, vector<8x16xbf16>
    %cst = arith.constant dense<0.000000e+00> : vector<16x16xf32>
    %9 = tpu.matmul %7, %8, %cst {dimension_numbers = #tpu.dot_dimension_numbers<[1], [0], [0], [1], [0, 0, 1, 1], [], []>} : vector<16x8xbf16>, vector<8x16xbf16>, vector<16x16xf32> -> vector<16x16xf32>
    %c0_i32_3 = arith.constant 0 : i32
    %10 = arith.cmpi eq, %arg1, %c0_i32_3 : i32
    %11 = arith.extui %10 : i1 to i32
    %c0_i32_4 = arith.constant 0 : i32
    %12 = arith.cmpi ne, %11, %c0_i32_4 : i32
    scf.if %12 {
      %cst_23 = arith.constant 0.000000e+00 : f32
      %39 = vector.broadcast %cst_23 : f32 to vector<8x16xf32>
      %c0_24 = arith.constant 0 : index
      %c0_25 = arith.constant 0 : index
      %40 = vector.load %arg9[%c0_24, %c0_25] : memref<8x16xf32, #tpu.memory_space<vmem>>, vector<8x16xf32>
      tpu.vector_store %arg9[%c0_24, %c0_25], %39 {strides = array<i32>} : memref<8x16xf32, #tpu.memory_space<vmem>>, vector<8x16xf32>,
      %cst_26 = arith.constant 0.000000e+00 : f32
      %41 = vector.broadcast %cst_26 : f32 to vector<8x16xf32>
      %c0_27 = arith.constant 0 : index
      %c0_28 = arith.constant 0 : index
      %42 = vector.load %arg10[%c0_27, %c0_28] : memref<8x16xf32, #tpu.memory_space<vmem>>, vector<8x16xf32>
      tpu.vector_store %arg10[%c0_27, %c0_28], %41 {strides = array<i32>} : memref<8x16xf32, #tpu.memory_space<vmem>>, vector<8x16xf32>,
    } else {
    }
    %c0_5 = arith.constant 0 : index
    %c0_6 = arith.constant 0 : index
    %c0_7 = arith.constant 0 : index
    %13 = vector.load %arg5[%c0_5, %c0_6, %c0_7] : memref<1x16x16xf32, #tpu.memory_space<vmem>>, vector<1x16x16xf32>
    %14 = vector.shape_cast %13 : vector<1x16x16xf32> to vector<16x16xf32>
    %15 = tpu.iota {dimensions = array<i32: 0>} : vector<16x16xi32>
    %c16_i32_8 = arith.constant 16 : i32
    %16 = arith.muli %arg1, %c16_i32_8 : i32
    %17 = vector.broadcast %16 : i32 to vector<16x16xi32>
    %18 = arith.addi %15, %17 : vector<16x16xi32>
    %c16_i32_9 = arith.constant 16 : i32
    %19 = vector.broadcast %c16_i32_9 : i32 to vector<16x16xi32>
    %20 = arith.cmpi slt, %18, %19 : vector<16x16xi32>
    %21 = arith.divf %9, %14 : vector<16x16xf32>
    %22 = math.log %21 : vector<16x16xf32>
    %cst_10 = arith.constant 0.000000e+00 : f32
    %23 = vector.broadcast %cst_10 : f32 to vector<16x16xf32>
    %24 = arith.select %20, %22, %23 : vector<16x16xi1>, vector<16x16xf32>
    %25 = arith.mulf %24, %24 : vector<16x16xf32>
    %c0_11 = arith.constant 0 : index
    %c0_12 = arith.constant 0 : index
    %26 = vector.load %arg9[%c0_11, %c0_12] : memref<8x16xf32, #tpu.memory_space<vmem>>, vector<8x16xf32>
    %27 = vector.shape_cast %24 : vector<16x16xf32> to vector<2x8x16xf32>
    %cst_13 = arith.constant dense<0.000000e+00> : vector<8x16xf32>
    %28 = vector.multi_reduction <add>, %27, %cst_13 [0] : vector<2x8x16xf32> to vector<8x16xf32>
    %29 = arith.addf %26, %28 : vector<8x16xf32>
    %c0_14 = arith.constant 0 : index
    %c0_15 = arith.constant 0 : index
    %30 = vector.load %arg9[%c0_14, %c0_15] : memref<8x16xf32, #tpu.memory_space<vmem>>, vector<8x16xf32>
    tpu.vector_store %arg9[%c0_14, %c0_15], %29 {strides = array<i32>} : memref<8x16xf32, #tpu.memory_space<vmem>>, vector<8x16xf32>,
    %c0_16 = arith.constant 0 : index
    %c0_17 = arith.constant 0 : index
    %31 = vector.load %arg10[%c0_16, %c0_17] : memref<8x16xf32, #tpu.memory_space<vmem>>, vector<8x16xf32>
    %32 = vector.shape_cast %25 : vector<16x16xf32> to vector<2x8x16xf32>
    %cst_18 = arith.constant dense<0.000000e+00> : vector<8x16xf32>
    %33 = vector.multi_reduction <add>, %32, %cst_18 [0] : vector<2x8x16xf32> to vector<8x16xf32>
    %34 = arith.addf %31, %33 : vector<8x16xf32>
    %c0_19 = arith.constant 0 : index
    %c0_20 = arith.constant 0 : index
    %35 = vector.load %arg10[%c0_19, %c0_20] : memref<8x16xf32, #tpu.memory_space<vmem>>, vector<8x16xf32>
    tpu.vector_store %arg10[%c0_19, %c0_20], %34 {strides = array<i32>} : memref<8x16xf32, #tpu.memory_space<vmem>>, vector<8x16xf32>,
    %c0_i32_21 = arith.constant 0 : i32
    %36 = arith.cmpi eq, %arg1, %c0_i32_21 : i32
    %37 = arith.extui %36 : i1 to i32
    %c0_i32_22 = arith.constant 0 : i32
    %38 = arith.cmpi ne, %37, %c0_i32_22 : i32
    scf.if %38 {
      %c0_23 = arith.constant 0 : index
      %c0_24 = arith.constant 0 : index
      %39 = vector.load %arg9[%c0_23, %c0_24] : memref<8x16xf32, #tpu.memory_space<vmem>>, vector<8x16xf32>
      %40 = vector.shape_cast %39 : vector<8x16xf32> to vector<1x8x16xf32>
      %cst_25 = arith.constant dense<0.000000e+00> : vector<1xf32>
      %41 = vector.multi_reduction <add>, %40, %cst_25 [1, 2] : vector<1x8x16xf32> to vector<1xf32>
      %42 = vector.shape_cast %41 : vector<1xf32> to vector<1x1x1xf32>
      %43 = vector.extract %42[0, 0, 0] : f32 from vector<1x1x1xf32>
      %44 = vector.broadcast %43 : f32 to vector<1x1xf32>
      %c0_26 = arith.constant 0 : index
      %c0_27 = arith.constant 0 : index
      %c0_28 = arith.constant 0 : index
      %45 = vector.load %arg6[%c0_26, %c0_27, %c0_28] : memref<1x1x1xf32, #tpu.memory_space<vmem>>, vector<1x1x1xf32>
      %46 = vector.shape_cast %45 : vector<1x1x1xf32> to vector<1x1xf32>
      %47 = vector.shape_cast %44 : vector<1x1xf32> to vector<1x1x1xf32>
      tpu.vector_store %arg6[%c0_26, %c0_27, %c0_28], %47 {strides = array<i32>} : memref<1x1x1xf32, #tpu.memory_space<vmem>>, vector<1x1x1xf32>,
      %c0_29 = arith.constant 0 : index
      %c0_30 = arith.constant 0 : index
      %48 = vector.load %arg10[%c0_29, %c0_30] : memref<8x16xf32, #tpu.memory_space<vmem>>, vector<8x16xf32>
      %49 = vector.shape_cast %48 : vector<8x16xf32> to vector<1x8x16xf32>
      %cst_31 = arith.constant dense<0.000000e+00> : vector<1xf32>
      %50 = vector.multi_reduction <add>, %49, %cst_31 [1, 2] : vector<1x8x16xf32> to vector<1xf32>
      %51 = vector.shape_cast %50 : vector<1xf32> to vector<1x1x1xf32>
      %52 = vector.extract %51[0, 0, 0] : f32 from vector<1x1x1xf32>
      %53 = vector.broadcast %52 : f32 to vector<1x1xf32>
      %c0_32 = arith.constant 0 : index
      %c0_33 = arith.constant 0 : index
      %c0_34 = arith.constant 0 : index
      %54 = vector.load %arg7[%c0_32, %c0_33, %c0_34] : memref<1x1x1xf32, #tpu.memory_space<vmem>>, vector<1x1x1xf32>
      %55 = vector.shape_cast %54 : vector<1x1x1xf32> to vector<1x1xf32>
      %56 = vector.shape_cast %53 : vector<1x1xf32> to vector<1x1x1xf32>
      tpu.vector_store %arg7[%c0_32, %c0_33, %c0_34], %56 {strides = array<i32>} : memref<1x1x1xf32, #tpu.memory_space<vmem>>, vector<1x1x1xf32>,
    } else {
    }
    return
  }
  func.func @transform_0(%arg0: i32, %arg1: i32) -> (i32, i32) {
    %c0_i32 = arith.constant 0 : i32
    %c0_i32_0 = arith.constant 0 : i32
    %c0_i32_1 = arith.constant 0 : i32
    return %c0_i32, %c0_i32_0 : i32, i32
  }
  func.func @transform_1(%arg0: i32, %arg1: i32) -> (i32, i32) {
    %c0_i32 = arith.constant 0 : i32
    %c0_i32_0 = arith.constant 0 : i32
    %c0_i32_1 = arith.constant 0 : i32
    return %c0_i32, %c0_i32_0 : i32, i32
  }
  func.func @transform_2(%arg0: i32, %arg1: i32) -> (i32, i32, i32) {
    %c0_i32 = arith.constant 0 : i32
    %c0_i32_0 = arith.constant 0 : i32
    %c0_i32_1 = arith.constant 0 : i32
    return %arg0, %c0_i32, %c0_i32_0 : i32, i32, i32
  }
  func.func @transform_3(%arg0: i32, %arg1: i32) -> (i32, i32, i32) {
    %c0_i32 = arith.constant 0 : i32
    %c0_i32_0 = arith.constant 0 : i32
    return %arg0, %arg1, %c0_i32 : i32, i32, i32
  }
  func.func @transform_4(%arg0: i32, %arg1: i32) -> (i32, i32, i32) {
    %c0_i32 = arith.constant 0 : i32
    %c0_i32_0 = arith.constant 0 : i32
    %c0_i32_1 = arith.constant 0 : i32
    return %arg0, %c0_i32, %c0_i32_0 : i32, i32, i32
  }
  func.func @transform_5(%arg0: i32, %arg1: i32) -> (i32, i32, i32) {
    %c0_i32 = arith.constant 0 : i32
    %c0_i32_0 = arith.constant 0 : i32
    %c0_i32_1 = arith.constant 0 : i32
    return %arg0, %c0_i32, %c0_i32_0 : i32, i32, i32
  }
}

</mosaic_0001>

<llo_original>
// kernel: tpu_custom_call.1
$region0: #{tpu_custom_call.1}
  #allocation0 [shape = 'u32[]', space=smem, size = 0x4, offset = 0x4, fixed_abs, tag = 'smem constant byte address 0x4 - core index']
  #allocation1 [shape = 'u32[72,128]{1,0:T(1,128)}', space=vmem, size = 0x9000, scoped, tag = 'internal scratch']
  #allocation2 [shape = 'bf16[8,16]{1,0:T(8,128)(2,1)}', space=vmem, size = 0x800, scoped, tag = 'scratch operand']
  #allocation3 [shape = 'f32[8,16]{1,0:T(8,128)}', space=vmem, size = 0x1000, scoped, tag = 'scratch operand']
  #allocation4 [shape = 'f32[8,16]{1,0:T(8,128)}', space=vmem, size = 0x1000, scoped, tag = 'scratch operand']
  %s0 = inlined_call_operand.vmem [shape: f32[16,8], index: 0, kind: input, shape index: {}]
  %s1 = inlined_call_operand.vmem [shape: bf16[8,16], index: 1, kind: input, shape index: {}]
  %s2 = inlined_call_operand.vmem [shape: bf16[2,8,8], index: 2, kind: input, shape index: {}]
  %s3 = inlined_call_operand.hbm [shape: f32[2,16,16], index: 3, kind: input, shape index: {}]
  %s4 = inlined_call_operand.vmem [shape: f32[2,1,1], index: 4, kind: output, shape index: {0}]
  %s5 = inlined_call_operand.vmem [shape: f32[2,1,1], index: 5, kind: output, shape index: {1}]
  %6 = xla_tuple %s4, %s5
  %s7 = sld [smem:[#allocation0]]
  $region73: #{tpu_custom_call.1} parent=0
    _
  %s9 = ssub.s32 1, %s7
  %s10 = scalar_select 0, %s9, %s7
  $region1: #{tpu_custom_call.1} parent=0
    #allocation5 [shape = 'u8[16384]{0}', space=vmem, size = 0x4000, scoped, tag = 'input window, operand 3']
    #allocation6 [shape = 's32[2]{0}', space=sflag, size = 0x8, scoped, tag = 'scoped memory for tpu_custom_call.1']
    %11 = vsyncpa [#allocation6], 0
    %s12 = scalar_lea.sflag [#allocation6], 1
    %13 = vsyncpa %s12, 0
    loop: start=0, step=1, limit=4
    $region2: #{tpu_custom_call.1} parent=1 // loop_pre_header
      _
    $region3: #{tpu_custom_call.1} parent=1 // loop_header
      %s15 = sphi 0, %s19
      %p16 = scmp.ge.s32.totalorder %s15, 4
      %s22 = sphi 0, %s34
      %s23 = sphi 0, %s30
      %s24 = sphi 0, %s22
      %s25 = sphi 0, %s23
      %s26 = sphi 0, %s24
      %s27 = sphi 0, %s25
      %s35 = sphi 0, %s35
      %s37 = sphi 0, %s35
      %s38 = sphi 0, %s37
      %s52 = sphi 0, %s38
      %s56 = sphi 0, %s56
      %s58 = sphi 0, %s56
      %s59 = sphi 0, %s58
      %s73 = sphi 0, %s59
      %s79 = sphi 0, %s81
      %s82 = sphi 0, %s79
      %s83 = sphi 0, %s82
      %s99 = sphi 0, %s83
      %s107 = sphi 0, %s109
      %s110 = sphi 0, %s107
      %s111 = sphi 0, %s110
      %s127 = sphi 0, %s111
      %s133 = sphi 0, %s135
      %s136 = sphi 0, %s133
      %s137 = sphi 0, %s136
      %s153 = sphi 0, %s137
      %s159 = sphi 0, %s161
      %s162 = sphi 0, %s159
      %s163 = sphi 0, %s162
      %s179 = sphi 0, %s163
    $region4: #{tpu_custom_call.1} parent=1 // loop_header_branch
      %18 = sbr.rel (%p16) target = $region8
    $region5: #{tpu_custom_call.1} parent=1 // loop_body
      %s20 = ssub.s32 %s15, 1
      %s21 = ssub.s32 %s15, 2
      %s28 = sadd.s32 1, %s23
      %p29 = scmp.ge.s32.totalorder %s28, 1
      %s30 = scalar_select %p29, 0, %s28
      %s31 = sadd.s32 1, %s22
      %s32 = scalar_select %p29, %s31, %s22
      %p33 = scmp.ge.s32.totalorder %s32, 2
      %s34 = scalar_select %p33, 0, %s32
      %s36 = sadd.s32 %s35, 1
      %p39 = scmp.eq.s32.totalorder %s15, 1
      %p40 = scmp.ne.s32.totalorder %s35, %s37
      %p41 = scmp.eq.s32.totalorder %s15, 0
      %p42 = por %p40, %p41
      %p43 = scmp.ne.s32.totalorder %s35, %s37
      %p44 = scmp.eq.s32.totalorder %s20, 1
      %p45 = por %p43, %p44
      %p46 = scmp.ne.s32.totalorder %s37, %s38
      %p47 = scmp.eq.s32.totalorder %s20, 0
      %p48 = por %p46, %p47
      %p49 = scmp.ne.s32.totalorder %s37, %s38
      %p50 = scmp.eq.s32.totalorder %s21, 1
      %p51 = por %p49, %p50
      %p53 = scmp.ne.s32.totalorder %s38, %s52
      %p54 = scmp.eq.s32.totalorder %s21, 0
      %p55 = por %p53, %p54
      %s57 = sadd.s32 %s56, 1
      %p60 = scmp.eq.s32.totalorder %s15, 1
      %p61 = scmp.ne.s32.totalorder %s56, %s58
      %p62 = scmp.eq.s32.totalorder %s15, 0
      %p63 = por %p61, %p62
      %p64 = scmp.ne.s32.totalorder %s56, %s58
      %p65 = scmp.eq.s32.totalorder %s20, 1
      %p66 = por %p64, %p65
      %p67 = scmp.ne.s32.totalorder %s58, %s59
      %p68 = scmp.eq.s32.totalorder %s20, 0
      %p69 = por %p67, %p68
      %p70 = scmp.ne.s32.totalorder %s58, %s59
      %p71 = scmp.eq.s32.totalorder %s21, 1
      %p72 = por %p70, %p71
      %p74 = scmp.ne.s32.totalorder %s59, %s73
      %p75 = scmp.eq.s32.totalorder %s21, 0
      %p76 = por %p74, %p75
      %s77 = ssub.s32 %s22, %s34
      %p78 = scmp.eq.s32.totalorder %s77, 0
      %s80 = sadd.s32 %s79, 1
      %s81 = scalar_select %p78, %s79, %s80
      %p84 = pneg %p78
      %p85 = scmp.eq.s32.totalorder %s15, 1
      %p86 = por %p84, %p85
      %p87 = scmp.ne.s32.totalorder %s79, %s82
      %p88 = scmp.eq.s32.totalorder %s15, 0
      %p89 = por %p87, %p88
      %p90 = scmp.ne.s32.totalorder %s79, %s82
      %p91 = scmp.eq.s32.totalorder %s20, 1
      %p92 = por %p90, %p91
      %p93 = scmp.ne.s32.totalorder %s82, %s83
      %p94 = scmp.eq.s32.totalorder %s20, 0
      %p95 = por %p93, %p94
      %p96 = scmp.ne.s32.totalorder %s82, %s83
      %p97 = scmp.eq.s32.totalorder %s21, 1
      %p98 = por %p96, %p97
      %p100 = scmp.ne.s32.totalorder %s83, %s99
      %p101 = scmp.eq.s32.totalorder %s21, 0
      %p102 = por %p100, %p101
      %s103 = ssub.s32 %s22, %s34
      %s104 = ssub.s32 %s23, %s30
      %s105 = sor.u32 %s103, %s104
      %p106 = scmp.eq.s32.totalorder %s105, 0
      %s108 = sadd.s32 %s107, 1
      %s109 = scalar_select %p106, %s107, %s108
      %p112 = pneg %p106
      %p113 = scmp.eq.s32.totalorder %s15, 1
      %p114 = por %p112, %p113
      %p115 = scmp.ne.s32.totalorder %s107, %s110
      %p116 = scmp.eq.s32.totalorder %s15, 0
      %p117 = por %p115, %p116
      %p118 = scmp.ne.s32.totalorder %s107, %s110
      %p119 = scmp.eq.s32.totalorder %s20, 1
      %p120 = por %p118, %p119
      %p121 = scmp.ne.s32.totalorder %s110, %s111
      %p122 = scmp.eq.s32.totalorder %s20, 0
      %p123 = por %p121, %p122
      %p124 = scmp.ne.s32.totalorder %s110, %s111
      %p125 = scmp.eq.s32.totalorder %s21, 1
      %p126 = por %p124, %p125
      %p128 = scmp.ne.s32.totalorder %s111, %s127
      %p129 = scmp.eq.s32.totalorder %s21, 0
      %p130 = por %p128, %p129
      %s131 = ssub.s32 %s22, %s34
      %p132 = scmp.eq.s32.totalorder %s131, 0
      %s134 = sadd.s32 %s133, 1
      %s135 = scalar_select %p132, %s133, %s134
      %p138 = pneg %p132
      %p139 = scmp.eq.s32.totalorder %s15, 1
      %p140 = por %p138, %p139
      %p141 = scmp.ne.s32.totalorder %s133, %s136
      %p142 = scmp.eq.s32.totalorder %s15, 0
      %p143 = por %p141, %p142
      %p144 = scmp.ne.s32.totalorder %s133, %s136
      %p145 = scmp.eq.s32.totalorder %s20, 1
      %p146 = por %p144, %p145
      %p147 = scmp.ne.s32.totalorder %s136, %s137
      %p148 = scmp.eq.s32.totalorder %s20, 0
      %p149 = por %p147, %p148
      %p150 = scmp.ne.s32.totalorder %s136, %s137
      %p151 = scmp.eq.s32.totalorder %s21, 1
      %p152 = por %p150, %p151
      %p154 = scmp.ne.s32.totalorder %s137, %s153
      %p155 = scmp.eq.s32.totalorder %s21, 0
      %p156 = por %p154, %p155
      %s157 = ssub.s32 %s22, %s34
      %p158 = scmp.eq.s32.totalorder %s157, 0
      %s160 = sadd.s32 %s159, 1
      %s161 = scalar_select %p158, %s159, %s160
      %p164 = pneg %p158
      %p165 = scmp.eq.s32.totalorder %s15, 1
      %p166 = por %p164, %p165
      %p167 = scmp.ne.s32.totalorder %s159, %s162
      %p168 = scmp.eq.s32.totalorder %s15, 0
      %p169 = por %p167, %p168
      %p170 = scmp.ne.s32.totalorder %s159, %s162
      %p171 = scmp.eq.s32.totalorder %s20, 1
      %p172 = por %p170, %p171
      %p173 = scmp.ne.s32.totalorder %s162, %s163
      %p174 = scmp.eq.s32.totalorder %s20, 0
      %p175 = por %p173, %p174
      %p176 = scmp.ne.s32.totalorder %s162, %s163
      %p177 = scmp.eq.s32.totalorder %s21, 1
      %p178 = por %p176, %p177
      %p180 = scmp.ne.s32.totalorder %s163, %s179
      %p181 = scmp.eq.s32.totalorder %s21, 0
      %p182 = por %p180, %p181
      %p183 = scmp.le.s32.totalorder 1, %s15
      %p184 = scmp.lt.s32.totalorder %s15, 3
      %p185 = pnand %p183, %p184
      %p186 = pneg %p185
      // Predicated region
      $region9: #{tpu_custom_call.1} parent=5 // pred_check
        _
      $region10: #{tpu_custom_call.1} parent=5 // pred_check_branch
        %188 = sbr.rel (%p185) target = $region12
      $region11: #{tpu_custom_call.1} parent=5 // pred_region
        %s189 = ssub.s32 %s15, 1
        // Predicated region
        $region13: #{tpu_custom_call.1} parent=11 // pred_check
          %p190 = pneg %p48
        $region14: #{tpu_custom_call.1} parent=11 // pred_check_branch
          %192 = sbr.rel (%p190) target = $region16
        $region15: #{tpu_custom_call.1} parent=11 // pred_region
          _
        $region16: #{tpu_custom_call.1} parent=11 // pred_fallthru
          _
        // Predicated region
        $region17: #{tpu_custom_call.1} parent=11 // pred_check
          %p193 = pneg %p69
        $region18: #{tpu_custom_call.1} parent=11 // pred_check_branch
          %195 = sbr.rel (%p193) target = $region20
        $region19: #{tpu_custom_call.1} parent=11 // pred_region
          _
        $region20: #{tpu_custom_call.1} parent=11 // pred_fallthru
          _
      $region12: #{tpu_custom_call.1} parent=5 // pred_fallthru
        _
      %p196 = scmp.lt.s32.totalorder %s15, 2
      // Predicated region
      $region21: #{tpu_custom_call.1} parent=5 // pred_check
        %p197 = pneg %p196
      $region22: #{tpu_custom_call.1} parent=5 // pred_check_branch
        %199 = sbr.rel (%p197) target = $region24
      $region23: #{tpu_custom_call.1} parent=5 // pred_region
        // Predicated region
        $region25: #{tpu_custom_call.1} parent=23 // pred_check
          %p200 = pneg %p89
        $region26: #{tpu_custom_call.1} parent=23 // pred_check_branch
          %202 = sbr.rel (%p200) target = $region28
        $region27: #{tpu_custom_call.1} parent=23 // pred_region
          %p203 = scmp.lt.s32.totalorder %s22, 1
          %s204 = scalar_select %p203, %s22, 1
          %s205 = smul.addr %s204, 4
          %s206 = scalar_lea.vmem %s2, %s205
        $region28: #{tpu_custom_call.1} parent=23 // pred_fallthru
          _
        // Predicated region
        $region29: #{tpu_custom_call.1} parent=23 // pred_check
          %p207 = pneg %p117
        $region30: #{tpu_custom_call.1} parent=23 // pred_check_branch
          %209 = sbr.rel (%p207) target = $region32
        $region31: #{tpu_custom_call.1} parent=23 // pred_region
          %s210 = sand.u32 %s107, 1
          %s211 = scalar_lea.sflag [#allocation6], %s210
          %s212 = sand.u32 %s107, 1
          %s213 = smul.addr %s212, 16
          %s214 = scalar_lea.vmem [#allocation5], %s213
          %s215 = smul.u32 2, %s23
          %217 = vsyncadd %s211, 0
          %s218 = smul.addr %s22, 2
          %s219 = sadd.s32 %s215, %s218
          %s220 = smul.addr %s219, 8
          %s221 = scalar_lea.hbm %s3, %s220
          %s222 = sshll.u32 %s221, 4
          %s223 = int_to_ptr.hbm [resolvable:$true] %s222
          %s224 = sshll.u32 %s214, 4
          %s225 = int_to_ptr.vmem [resolvable:$true] %s224
          %230 = dma.hbm_to_vmem [thread:$0]  %s223, 256, %s225, %s211, 128, 128, 8
        $region32: #{tpu_custom_call.1} parent=23 // pred_fallthru
          _
      $region24: #{tpu_custom_call.1} parent=5 // pred_fallthru
        _
      %p231 = scmp.le.s32.totalorder 1, %s15
      %p232 = scmp.lt.s32.totalorder %s15, 3
      %p233 = pnand %p231, %p232
      %p234 = pneg %p233
      // Predicated region
      $region33: #{tpu_custom_call.1} parent=5 // pred_check
        _
      $region34: #{tpu_custom_call.1} parent=5 // pred_check_branch
        %236 = sbr.rel (%p233) target = $region36
      $region35: #{tpu_custom_call.1} parent=5 // pred_region
        %s237 = ssub.s32 %s15, 1
        %s238 = sand.u32 %s110, 1
        %s239 = scalar_lea.sflag [#allocation6], %s238
        %s240 = sand.u32 %s110, 1
        %s241 = smul.addr %s240, 16
        %s242 = scalar_lea.vmem [#allocation5], %s241
        // Predicated region
        $region37: #{tpu_custom_call.1} parent=35 // pred_check
          %p243 = pneg %p123
        $region38: #{tpu_custom_call.1} parent=35 // pred_check_branch
          %245 = sbr.rel (%p243) target = $region40
        $region39: #{tpu_custom_call.1} parent=35 // pred_region
          %247 = dma.done %s239, 256
        $region40: #{tpu_custom_call.1} parent=35 // pred_fallthru
          _
        %p248 = pneg %p48
        %p249 = pneg %p45
        %p250 = pneg %p69
        %p251 = pneg %p66
        %p252 = scmp.lt.s32.totalorder %s24, 1
        %s253 = scalar_select %p252, %s24, 1
        %s254 = smul.addr %s253, 4
        %s255 = scalar_lea.vmem %s2, %s254
        %p256 = pneg %p95
        %p257 = pneg %p92
        %s258 = sand.u32 %s110, 1
        %s259 = scalar_lea.sflag [#allocation6], %s258
        %s260 = sand.u32 %s110, 1
        %s261 = smul.addr %s260, 16
        %s262 = scalar_lea.vmem [#allocation5], %s261
        %p263 = pneg %p123
        %p264 = pneg %p120
        %p265 = pneg %p149
        %p266 = pneg %p146
        %p267 = scmp.lt.s32.totalorder %s24, 1
        %s268 = scalar_select %p267, %s24, 1
        %s269 = scalar_lea.vmem %s4, %s268
        %p270 = pneg %p175
        %p271 = pneg %p172
        %p272 = scmp.lt.s32.totalorder %s24, 1
        %s273 = scalar_select %p272, %s24, 1
        %s274 = scalar_lea.vmem %s5, %s273
        %p275 = scmp.lt.s32.totalorder %s24, 1
        %s276 = scalar_select %p275, %s24, 1
        %s277 = smul.addr %s276, 4
        %s278 = scalar_lea.vmem %s2, %s277
        %s279 = smul.u32 2, %s25
        %p280 = scmp.lt.s32.totalorder %s24, 1
        %s281 = scalar_select %p280, %s24, 1
        %s282 = scalar_lea.vmem %s4, %s281
        %p283 = scmp.lt.s32.totalorder %s24, 1
        %s284 = scalar_select %p283, %s24, 1
        %s285 = scalar_lea.vmem %s5, %s284
        %p287 = scmp.eq.s32.totalorder %s25, 0
        // Predicated region
        $region41: #{tpu_custom_call.1} parent=35 // pred_check
          %p288 = pneg %p287
        $region42: #{tpu_custom_call.1} parent=35 // pred_check_branch
          %290 = sbr.rel (%p288) target = $region44
        $region43: #{tpu_custom_call.1} parent=35 // pred_region
          %v291 = vld [vmem:[%s278] sm:$0xf]
          %v292 = vld [vmem:[%s1] sm:$0xf]
          %vm293 = vcmask 64512
          %v295 = vsel %vm293, %v291, 0
          %vm297 = vcmask 1043456
          %v299 = vsel %vm297, %v292, 0
          %301 = vmatpush.bf16.msra.mxu0 0
          %302 = vmatpush.bf16.msra.mxu0 0
          %303 = vmatpush.bf16.msra.mxu0 0
          %304 = vmatpush.bf16.msra.mxu0 0
          %305 = vmatpush.bf16.msra.mxu0 0
          %306 = vmatpush.bf16.msra.mxu0 0
          %307 = vmatpush.bf16.msra.mxu0 0
          %308 = vmatpush.bf16.msra.mxu0 %v299
          %309 = vmatmul.bf16.gmra.mxu0 %v295
          %v310 = vpop.f32.mrf.mxu0
          %v311 = vadd.f32 0.0, %v310
          %v312 = vpop.f32.mrf.mxu0
          %313 = vdwg.mxu0
          %v314 = vpack.c.bf16 %v311, %v311
          %vm315 = vcmask 125952
          %316 = vst.msk [vmem:[#allocation2] sm:$0xf] %vm315, %v314
        $region44: #{tpu_custom_call.1} parent=35 // pred_fallthru
          _
        %s317 = smul.u32 %s25, 16
        %s318 = scalar_lea.vmem %s0, %s317
        %v319 = vld [vmem:[%s318] sm:$0xff]
        %v320 = vld [vmem:[%s318 + $0x8] sm:$0xff]
        %v321 = vpack.c.bf16 %v320, %v319
        %v322 = vld [vmem:[#allocation2] sm:$0xf]
        %vm323 = vcmask 64512
        %v325 = vsel %vm323, %v321, 0
        %vm327 = vcmask 1043456
        %v329 = vsel %vm327, %v322, 0
        %331 = vmatpush.bf16.msra.mxu0 0
        %332 = vmatpush.bf16.msra.mxu0 0
        %333 = vmatpush.bf16.msra.mxu0 0
        %334 = vmatpush.bf16.msra.mxu0 0
        %335 = vmatpush.bf16.msra.mxu0 0
        %336 = vmatpush.bf16.msra.mxu0 0
        %337 = vmatpush.bf16.msra.mxu0 0
        %338 = vmatpush.bf16.msra.mxu0 %v329
        %339 = vmatmul.bf16.gmra.mxu0 %v325
        %v340 = vpop.f32.mrf.mxu0
        %v341 = vadd.f32 0.0, %v340
        %v342 = vpop.f32.mrf.mxu0
        %v343 = vadd.f32 0.0, %v342
        %344 = vdwg.mxu0
        // Predicated region
        $region45: #{tpu_custom_call.1} parent=35 // pred_check
          %p345 = pneg %p287
        $region46: #{tpu_custom_call.1} parent=35 // pred_check_branch
          %347 = sbr.rel (%p345) target = $region48
        $region47: #{tpu_custom_call.1} parent=35 // pred_region
          %vm348 = vcmask 130048
          %349 = vst.msk [vmem:[#allocation3] sm:$0xff] %vm348, 0.0
          %350 = vst.msk [vmem:[#allocation4] sm:$0xff] %vm348, 0.0
        $region48: #{tpu_custom_call.1} parent=35 // pred_fallthru
          _
        %v351 = vld [vmem:[%s242] sm:$0xff]
        %v352 = vld [vmem:[%s242 + $0x8] sm:$0xff]
        %v353 = vlaneseq
        %v354 = vshrl.u32 %v353, 7
        %v355 = vadd.s32 %v354, 8
        %v356 = vstv %s317
        %v357 = vadd.s32 %v354, %v356
        %v358 = vadd.s32 %v355, %v356
        %vm359 = vcmp.lt.s32.totalorder %v357, 16
        %vm360 = vcmp.lt.s32.totalorder %v358, 16
        %v361 = vrcp.pop %v351
        %v362 = vmul.f32 %v351, %v361
        %v363 = vsub.f32 1.0, %v362
        %v364 = vmul.f32 %v361, %v363
        %v365 = vadd.f32 %v361, %v364
        %vm366 = vweird.f32 %v351
        %vm367 = vweird.f32 %v361
        %vm368 = vmor %vm366, %vm367
        %v369 = vsel %vm368, %v361, %v365
        %v370 = vand.u32 2147483647, %v351
        %vm371 = vcmp.eq.f32.partialorder %v370, 8.507059e+37
        %v372 = vand.u32 %v351, 2147483648
        %v373 = vor.u32 1.1754944e-38, %v372
        %v374 = vsel %vm371, %v373, %v369
        %v375 = vmul.f32 %v341, %v374
        %v376 = vrcp.pop %v352
        %v377 = vmul.f32 %v352, %v376
        %v378 = vsub.f32 1.0, %v377
        %v379 = vmul.f32 %v376, %v378
        %v380 = vadd.f32 %v376, %v379
        %vm381 = vweird.f32 %v352
        %vm382 = vweird.f32 %v376
        %vm383 = vmor %vm381, %vm382
        %v384 = vsel %vm383, %v376, %v380
        %v385 = vand.u32 2147483647, %v352
        %vm386 = vcmp.eq.f32.partialorder %v385, 8.507059e+37
        %v387 = vand.u32 %v352, 2147483648
        %v388 = vor.u32 1.1754944e-38, %v387
        %v389 = vsel %vm386, %v388, %v384
        %v390 = vmul.f32 %v343, %v389
        %v391 = vlog2.pop %v375
        %v392 = vmul.f32 %v391, 0.6931472
        %v393 = vlog2.pop %v390
        %v394 = vmul.f32 %v393, 0.6931472
        %v395 = vsel %vm359, %v392, 0.0
        %v396 = vsel %vm360, %v394, 0.0
        %v397 = vmul.f32 %v395, %v395
        %v398 = vmul.f32 %v396, %v396
        %v399 = vld [vmem:[#allocation3] sm:$0xff]
        %vm400 = vcmask 130048
        %v401 = vsel %vm400, %v395, 0.0
        %v402 = vsel %vm400, %v396, 0.0
        %v403 = vadd.f32 %v401, %v402
        %v404 = vadd.f32 %v399, %v403
        %405 = vst.msk [vmem:[#allocation3] sm:$0xff] %vm400, %v404
        %v406 = vld [vmem:[#allocation4] sm:$0xff]
        %v407 = vsel %vm400, %v397, 0.0
        %v408 = vsel %vm400, %v398, 0.0
        %v409 = vadd.f32 %v407, %v408
        %v410 = vadd.f32 %v406, %v409
        %411 = vst.msk [vmem:[#allocation4] sm:$0xff] %vm400, %v410
        // Predicated region
        $region49: #{tpu_custom_call.1} parent=35 // pred_check
          %p412 = pneg %p287
        $region50: #{tpu_custom_call.1} parent=35 // pred_check_branch
          %414 = sbr.rel (%p412) target = $region52
        $region51: #{tpu_custom_call.1} parent=35 // pred_region
          %v415 = vld [vmem:[#allocation3] sm:$0xff]
          %v416 = vsel %vm400, %v415, 0.0
          %417 = vadd.xlane.f32.xlu0 %v416
          %v418 = vpop.xlane.xlu0 %417
          %v419 = vrot.slane %v418, 4
          %v420 = vadd.f32 %v418, %v419
          %v421 = vrot.slane %v420, 2
          %v422 = vadd.f32 %v420, %v421
          %v423 = vrot.slane %v422, 1
          %v424 = vadd.f32 %v422, %v423
          %s425 = vtos %v424
          %v426 = vstv %s425
          %vm427 = vcmask 0
          %428 = vst.msk [vmem:[%s282] sm:$0x1] %vm427, %v426
          %v429 = vld [vmem:[#allocation4] sm:$0xff]
          %v430 = vsel %vm400, %v429, 0.0
          %431 = vadd.xlane.f32.xlu0 %v430
          %v432 = vpop.xlane.xlu0 %431
          %v433 = vrot.slane %v432, 4
          %v434 = vadd.f32 %v432, %v433
          %v435 = vrot.slane %v434, 2
          %v436 = vadd.f32 %v434, %v435
          %v437 = vrot.slane %v436, 1
          %v438 = vadd.f32 %v436, %v437
          %s439 = vtos %v438
          %v440 = vstv %s439
          %441 = vst.msk [vmem:[%s285] sm:$0x1] %vm427, %v440
        $region52: #{tpu_custom_call.1} parent=35 // pred_fallthru
          _
        %p442 = scmp.lt.s32.totalorder %s24, 1
        %s443 = scalar_select %p442, %s24, 1
        %s444 = scalar_lea.vmem %s4, %s443
        %p445 = scmp.lt.s32.totalorder %s24, 1
        %s446 = scalar_select %p445, %s24, 1
        %s447 = scalar_lea.vmem %s5, %s446
        // Predicated region
        $region53: #{tpu_custom_call.1} parent=35 // pred_check
          %p448 = pneg %p146
        $region54: #{tpu_custom_call.1} parent=35 // pred_check_branch
          %450 = sbr.rel (%p448) target = $region56
        $region55: #{tpu_custom_call.1} parent=35 // pred_region
          _
        $region56: #{tpu_custom_call.1} parent=35 // pred_fallthru
          _
        // Predicated region
        $region57: #{tpu_custom_call.1} parent=35 // pred_check
          %p451 = pneg %p172
        $region58: #{tpu_custom_call.1} parent=35 // pred_check_branch
          %453 = sbr.rel (%p451) target = $region60
        $region59: #{tpu_custom_call.1} parent=35 // pred_region
          _
        $region60: #{tpu_custom_call.1} parent=35 // pred_fallthru
          _
      $region36: #{tpu_custom_call.1} parent=5 // pred_fallthru
        _
      %p454 = scmp.le.s32.totalorder 2, %s15
      // Predicated region
      $region61: #{tpu_custom_call.1} parent=5 // pred_check
        %p455 = pneg %p454
      $region62: #{tpu_custom_call.1} parent=5 // pred_check_branch
        %457 = sbr.rel (%p455) target = $region64
      $region63: #{tpu_custom_call.1} parent=5 // pred_region
        %s458 = ssub.s32 %s15, 2
        // Predicated region
        $region65: #{tpu_custom_call.1} parent=63 // pred_check
          %p459 = pneg %p152
        $region66: #{tpu_custom_call.1} parent=63 // pred_check_branch
          %461 = sbr.rel (%p459) target = $region68
        $region67: #{tpu_custom_call.1} parent=63 // pred_region
          %p462 = scmp.lt.s32.totalorder %s26, 1
          %s463 = scalar_select %p462, %s26, 1
          %s464 = scalar_lea.vmem %s4, %s463
        $region68: #{tpu_custom_call.1} parent=63 // pred_fallthru
          _
        // Predicated region
        $region69: #{tpu_custom_call.1} parent=63 // pred_check
          %p465 = pneg %p178
        $region70: #{tpu_custom_call.1} parent=63 // pred_check_branch
          %467 = sbr.rel (%p465) target = $region72
        $region71: #{tpu_custom_call.1} parent=63 // pred_region
          %p468 = scmp.lt.s32.totalorder %s26, 1
          %s469 = scalar_select %p468, %s26, 1
          %s470 = scalar_lea.vmem %s5, %s469
        $region72: #{tpu_custom_call.1} parent=63 // pred_fallthru
          _
      $region64: #{tpu_custom_call.1} parent=5 // pred_fallthru
        _
    $region6: #{tpu_custom_call.1} parent=1 // loop_footer
      %s19 = sadd.s32 1, %s15
    $region7: #{tpu_custom_call.1} parent=1 // loop_footer_branch
      %14 = sbr.rel target = $region3
    $region8: #{tpu_custom_call.1} parent=1 // loop_exit
      _
    %471 = vsyncpa [#allocation6], 1
    %s472 = scalar_lea.sflag [#allocation6], 1
    %473 = vsyncpa %s472, 1

</llo_original>
